<compile_context>
chip_gen: v6e
topology: v6e:2x2x1
jax: 0.10.0
libtpu: 0.0.40
codegen_flags: <defaults>
</compile_context>

<pallas_src>
import functools

import jax
import jax.numpy as jnp
from jax.experimental import pallas as pl
from jax.experimental.pallas import tpu as pltpu


# ----------------------------------------------------------------------------
# FC helper: sigmoid(relu(pooled @ W1^T) @ W2^T) in f32.
# ----------------------------------------------------------------------------
def _se_fc(pooled, w1, w2, *, use_mxu):
    """pooled: (Bt, C) f32.

    If use_mxu:  w1 = fc1.weight.T (C, R), w2 = fc2.weight.T (R, C) -> MXU dots.
    Else:        w1 = fc1.weight   (R, C), w2 = fc2.weight.T (R, C) -> VPU/XLU,
                 unrolled over the tiny bottleneck R (<= 4).
    """
    if use_mxu:
        h = jnp.dot(pooled, w1, preferred_element_type=jnp.float32)        # (Bt, R)
        h = jnp.maximum(h, 0.0)
        g = jnp.dot(h, w2, preferred_element_type=jnp.float32)             # (Bt, C)
    else:
        r_dim = w1.shape[0]
        # fc1 + ReLU: h[b, r] = sum_c pooled[b, c] * w1[r, c]
        h_cols = [jnp.sum(pooled * w1[r:r + 1, :], axis=-1, keepdims=True)
                  for r in range(r_dim)]
        h = jnp.maximum(jnp.concatenate(h_cols, axis=-1), 0.0)             # (Bt, R)
        # fc2: g[b, c] = sum_r h[b, r] * w2[r, c]  (pure VPU, unrolled)
        g = h[:, 0:1] * w2[0:1, :]
        for r in range(1, r_dim):
            g = g + h[:, r:r + 1] * w2[r:r + 1, :]
    return jax.nn.sigmoid(g)


# ----------------------------------------------------------------------------
# Kernels
# ----------------------------------------------------------------------------
def _se_fused_kernel(x_ref, w1_ref, w2_ref, o_ref, *, inv_hw, use_mxu):
    # Squeeze: read the tile for the pool only (f32 accumulation); the big
    # value dies before the FC phase instead of staying live across it.
    pooled = jnp.sum(x_ref[...].astype(jnp.float32), axis=-1) * jnp.float32(inv_hw)
    g = _se_fc(pooled, w1_ref[...], w2_ref[...], use_mxu=use_mxu)           # (Bt, C)
    # Excite: re-load x from VMEM (vld is cheap), scale in the input dtype;
    # the gate broadcast is materialized exactly once.
    gate = g.astype(o_ref.dtype)[:, :, None]
    o_ref[...] = x_ref[...] * gate


def _se_pool_kernel(x_ref, p_ref, *, inv_hw):
    # (1, ct, HW) -> (1, ct) global average pool, f32 accumulation.
    p_ref[...] = (jnp.sum(x_ref[...].astype(jnp.float32), axis=-1)
                  * jnp.float32(inv_hw))


def _se_gate_kernel(pooled_ref, w1_ref, w2_ref, g_ref, *, use_mxu):
    g_ref[...] = _se_fc(pooled_ref[...], w1_ref[...], w2_ref[...], use_mxu=use_mxu)


def _se_scale_kernel(g_ref, x_ref, o_ref):
    gate = g_ref[...].astype(o_ref.dtype)[:, :, None]                       # (1, ct, 1)
    o_ref[...] = x_ref[...] * gate


# ----------------------------------------------------------------------------
# Wrapper / tiling helpers
# ----------------------------------------------------------------------------
def _tensorcores_per_chip():
    # v7x has 2 TensorCores per chip; v5e/v6e have 1.
    try:
        kind = jax.devices()[0].device_kind.lower()
    except Exception:
        return 1
    return 2 if "v7" in kind else 1


def _largest_divisor_leq(n, k):
    k = max(1, min(n, k))
    for d in range(k, 0, -1):
        if n % d == 0:
            return d
    return 1


def _pick_channel_tile(c, hw, itemsize, budget):
    """Largest multiple-of-128 divisor of c whose (ct, hw) tile fits 4x in budget."""
    if c % 128 != 0:
        return None
    max_ct = budget // (4 * hw * itemsize)
    best, ct = None, 128
    while ct <= c:
        if c % ct == 0 and ct <= max_ct:
            best = ct
        ct += 128
    return best


def squeeze_excite_pallas(x, w1, w2, *, vmem_tile_budget_bytes=8 << 20):
    """Squeeze-Excite forward.

    x: (B, C, H, W); w1 = fc1.weight (R, C); w2 = fc2.weight (C, R).
    Returns (B, C, H, W) with the same dtype as x.
    """
    B, C, H, W = x.shape
    HW = H * W
    R = w1.shape[0]
    assert w1.shape == (R, C) and w2.shape == (C, R)

    itemsize = x.dtype.itemsize
    use_mxu = R > 4
    # Pre-cast / pre-transpose weights once (no per-grid-step converts in-kernel).
    w1_k = (w1.T if use_mxu else w1).astype(jnp.float32)     # (C,R) or (R,C)
    w2_k = w2.T.astype(jnp.float32)                          # (R, C)

    xr = x.reshape(B, C, HW)
    budget = vmem_tile_budget_bytes
    bytes_per_batch = C * HW * itemsize
    inv_hw = 1.0 / HW

    # TODO(synk): when HW % 128 != 0 but C % 128 == 0, run in (B, HW, C) layout
    # (C as lane axis) to avoid masked vst.msk partial stores on 7x7/14x14 maps.

    vmem_limit = None if budget <= (12 << 20) else min(48 << 20, 5 * budget)

    def call_fused(bt, vlimit):
        grid = (B // bt,)
        cost = pl.CostEstimate(
            flops=2 * B * C * HW + 4 * B * C * R,
            transcendentals=B * C,
            bytes_accessed=2 * B * C * HW * itemsize + 2 * R * C * 4,
        )
        out = pl.pallas_call(
            functools.partial(_se_fused_kernel, inv_hw=inv_hw, use_mxu=use_mxu),
            out_shape=jax.ShapeDtypeStruct((B, C, HW), x.dtype),
            grid_spec=pltpu.PrefetchScalarGridSpec(
                num_scalar_prefetch=0,
                grid=grid,
                in_specs=[
                    pl.BlockSpec((bt, C, HW), lambda b: (b, 0, 0)),
                    pl.BlockSpec(w1_k.shape, lambda b: (0, 0)),
                    pl.BlockSpec(w2_k.shape, lambda b: (0, 0)),
                ],
                out_specs=pl.BlockSpec((bt, C, HW), lambda b: (b, 0, 0)),
            ),
            compiler_params=pltpu.CompilerParams(
                dimension_semantics=("parallel",),
                vmem_limit_bytes=vlimit),
            cost_estimate=cost,
        )(xr, w1_k, w2_k)
        return out.reshape(B, C, H, W)

    # -------------------- fused single-pass path --------------------
    if 4 * bytes_per_batch <= budget:
        bt_budget = max(1, budget // (4 * bytes_per_batch))
        bt_cap = B
        if _tensorcores_per_chip() >= 2 and B >= 2:
            bt_cap = (B + 1) // 2          # keep >= 2 grid steps for megacore
        bt = _largest_divisor_leq(B, min(bt_budget, bt_cap))
        return call_fused(bt, vmem_limit)

    # -------------------- channel-tiled two-pass path --------------------
    ct = _pick_channel_tile(C, HW, itemsize, budget)
    if ct is None:
        # TODO(synk): add an HW-tiled pooling pass for huge-HW / small-C inputs;
        # fall back to one batch element per step with a raised VMEM limit.
        return call_fused(1, min(60 << 20, 4 * bytes_per_batch + (8 << 20)))

    n_c = C // ct

    pooled = pl.pallas_call(
        functools.partial(_se_pool_kernel, inv_hw=inv_hw),
        out_shape=jax.ShapeDtypeStruct((B, C), jnp.float32),
        grid_spec=pltpu.PrefetchScalarGridSpec(
            num_scalar_prefetch=0,
            grid=(B, n_c),
            in_specs=[pl.BlockSpec((1, ct, HW), lambda b, c: (b, c, 0))],
            out_specs=pl.BlockSpec((1, ct), lambda b, c: (b, c)),
        ),
        compiler_params=pltpu.CompilerParams(
            dimension_semantics=("parallel", "parallel"),
            vmem_limit_bytes=vmem_limit),
        cost_estimate=pl.CostEstimate(
            flops=B * C * HW, transcendentals=0,
            bytes_accessed=B * C * HW * itemsize + B * C * 4),
    )(xr)

    # Tiny FC + sigmoid on the (B, C) pooled vector: whole arrays in VMEM.
    gate = pl.pallas_call(
        functools.partial(_se_gate_kernel, use_mxu=use_mxu),
        out_shape=jax.ShapeDtypeStruct((B, C), jnp.float32),
    )(pooled, w1_k, w2_k)

    out = pl.pallas_call(
        _se_scale_kernel,
        out_shape=jax.ShapeDtypeStruct((B, C, HW), x.dtype),
        grid_spec=pltpu.PrefetchScalarGridSpec(
            num_scalar_prefetch=0,
            grid=(B, n_c),
            in_specs=[
                pl.BlockSpec((1, ct), lambda b, c: (b, c)),
                pl.BlockSpec((1, ct, HW), lambda b, c: (b, c, 0)),
            ],
            out_specs=pl.BlockSpec((1, ct, HW), lambda b, c: (b, c, 0)),
        ),
        compiler_params=pltpu.CompilerParams(
            dimension_semantics=("parallel", "parallel"),
            vmem_limit_bytes=vmem_limit),
        cost_estimate=pl.CostEstimate(
            flops=B * C * HW, transcendentals=0,
            bytes_accessed=2 * B * C * HW * itemsize + B * C * 4),
    )(gate, xr)
    return out.reshape(B, C, H, W)


def _reference(x, w1, w2):
    # Pure-JAX reference matching the PyTorch forward.
    pooled = jnp.mean(x, axis=(2, 3))                      # (B, C)
    h = jnp.maximum(pooled @ w1.T, 0.0)                    # (B, R)
    g = jax.nn.sigmoid(h @ w2.T)                           # (B, C)
    return x * g[:, :, None, None]


if __name__ == "__main__":
    # --- Module config from the spec: in_channels=32, reduction='/16' -> R=2 ---
    B, C, H, W = 2, 32, 16, 16
    R = C // 16

    key = jax.random.PRNGKey(0)
    kx, k1, k2 = jax.random.split(key, 3)
    x = jax.random.normal(kx, (B, C, H, W), dtype=jnp.float32)
    w1 = jax.random.normal(k1, (R, C), dtype=jnp.float32) * 0.1   # fc1.weight
    w2 = jax.random.normal(k2, (C, R), dtype=jnp.float32) * 0.1   # fc2.weight

    out = squeeze_excite_pallas(x, w1, w2)
    jax.block_until_ready(out)
    ref = _reference(x, w1, w2)
    assert out.shape == (B, C, H, W) and out.dtype == x.dtype
    assert jnp.allclose(out, ref, atol=1e-5, rtol=1e-5)

    # --- Exercise the channel-tiled two-pass path and the MXU FC path by
    #     forcing a tiny VMEM tile budget on a 128-multiple channel count. ---
    B2, C2, H2, W2 = 2, 256, 4, 4
    R2 = C2 // 16
    kx2, k3, k4 = jax.random.split(jax.random.PRNGKey(0), 3)
    x2 = jax.random.normal(kx2, (B2, C2, H2, W2), dtype=jnp.float32)
    w1b = jax.random.normal(k3, (R2, C2), dtype=jnp.float32) * 0.05
    w2b = jax.random.normal(k4, (C2, R2), dtype=jnp.float32) * 0.05
    out2 = squeeze_excite_pallas(x2, w1b, w2b, vmem_tile_budget_bytes=32 * 1024)
    jax.block_until_ready(out2)
    ref2 = _reference(x2, w1b, w2b)
    assert jnp.allclose(out2, ref2, atol=1e-5, rtol=1e-5)

    print("KERNEL_OK")
</pallas_src>

<mosaic_0001>
module attributes {stable_mosaic.version = 11 : i64} {
  func.func @_se_fused_kernel(%arg0: i32, %arg1: memref<2x32x256xf32, #tpu.memory_space<vmem>>, %arg2: memref<2x32xf32, #tpu.memory_space<vmem>>, %arg3: memref<2x32xf32, #tpu.memory_space<vmem>>, %arg4: memref<2x32x256xf32, #tpu.memory_space<vmem>>) attributes {dimension_semantics = [#tpu.dimension_semantics<parallel>], iteration_bounds = array<i64: 1>, scalar_prefetch = 0 : i64, scratch_operands = 0 : i64, tpu.core_type = #tpu.core_type<tc>, window_params = [{transform_indices = @transform_0, window_bounds = array<i64: 2, 32, 256>}, {pipeline_mode = #tpu.pipeline_mode<synchronous>, transform_indices = @transform_1, window_bounds = array<i64: 2, 32>}, {pipeline_mode = #tpu.pipeline_mode<synchronous>, transform_indices = @transform_2, window_bounds = array<i64: 2, 32>}, {transform_indices = @transform_3, window_bounds = array<i64: 2, 32, 256>}]} {
    %c0 = arith.constant 0 : index
    %c0_0 = arith.constant 0 : index
    %c0_1 = arith.constant 0 : index
    %0 = vector.load %arg1[%c0, %c0_0, %c0_1] : memref<2x32x256xf32, #tpu.memory_space<vmem>>, vector<2x32x256xf32>
    %cst = arith.constant dense<0.000000e+00> : vector<2x32xf32>
    %1 = vector.multi_reduction <add>, %0, %cst [2] : vector<2x32x256xf32> to vector<2x32xf32>
    %cst_2 = arith.constant 3.906250e-03 : f32
    %2 = vector.broadcast %cst_2 : f32 to vector<2x32xf32>
    %3 = arith.mulf %1, %2 : vector<2x32xf32>
    %c0_3 = arith.constant 0 : index
    %c0_4 = arith.constant 0 : index
    %4 = vector.load %arg2[%c0_3, %c0_4] : memref<2x32xf32, #tpu.memory_space<vmem>>, vector<2x32xf32>
    %c0_5 = arith.constant 0 : index
    %c0_6 = arith.constant 0 : index
    %5 = vector.load %arg3[%c0_5, %c0_6] : memref<2x32xf32, #tpu.memory_space<vmem>>, vector<2x32xf32>
    %6 = vector.extract_strided_slice %4 {offsets = [0, 0], sizes = [1, 32], strides = [1, 1]} : vector<2x32xf32> to vector<1x32xf32>
    %7 = vector.broadcast %6 : vector<1x32xf32> to vector<2x32xf32>
    %8 = arith.mulf %3, %7 : vector<2x32xf32>
    %cst_7 = arith.constant dense<0.000000e+00> : vector<2xf32>
    %9 = vector.multi_reduction <add>, %8, %cst_7 [1] : vector<2x32xf32> to vector<2xf32>
    %10 = vector.shape_cast %9 : vector<2xf32> to vector<2x1xf32>
    %11 = vector.extract_strided_slice %4 {offsets = [1, 0], sizes = [1, 32], strides = [1, 1]} : vector<2x32xf32> to vector<1x32xf32>
    %12 = vector.broadcast %11 : vector<1x32xf32> to vector<2x32xf32>
    %13 = arith.mulf %3, %12 : vector<2x32xf32>
    %cst_8 = arith.constant dense<0.000000e+00> : vector<2xf32>
    %14 = vector.multi_reduction <add>, %13, %cst_8 [1] : vector<2x32xf32> to vector<2xf32>
    %15 = vector.shape_cast %14 : vector<2xf32> to vector<2x1xf32>
    %16 = tpu.concatenate %10, %15 in 1 : vector<2x1xf32>, vector<2x1xf32> -> vector<2x2xf32>
    %cst_9 = arith.constant 0.000000e+00 : f32
    %17 = vector.broadcast %cst_9 : f32 to vector<2x2xf32>
    %18 = arith.maximumf %16, %17 : vector<2x2xf32>
    %19 = vector.extract_strided_slice %18 {offsets = [0, 0], sizes = [2, 1], strides = [1, 1]} : vector<2x2xf32> to vector<2x1xf32>
    %20 = vector.extract_strided_slice %5 {offsets = [0, 0], sizes = [1, 32], strides = [1, 1]} : vector<2x32xf32> to vector<1x32xf32>
    %21 = vector.broadcast %19 : vector<2x1xf32> to vector<2x32xf32>
    %22 = vector.broadcast %20 : vector<1x32xf32> to vector<2x32xf32>
    %23 = arith.mulf %21, %22 : vector<2x32xf32>
    %24 = vector.extract_strided_slice %18 {offsets = [0, 1], sizes = [2, 1], strides = [1, 1]} : vector<2x2xf32> to vector<2x1xf32>
    %25 = vector.extract_strided_slice %5 {offsets = [1, 0], sizes = [1, 32], strides = [1, 1]} : vector<2x32xf32> to vector<1x32xf32>
    %26 = vector.broadcast %24 : vector<2x1xf32> to vector<2x32xf32>
    %27 = vector.broadcast %25 : vector<1x32xf32> to vector<2x32xf32>
    %28 = arith.mulf %26, %27 : vector<2x32xf32>
    %29 = arith.addf %23, %28 : vector<2x32xf32>
    %30 = arith.negf %29 : vector<2x32xf32>
    %31 = math.exp %30 : vector<2x32xf32>
    %cst_10 = arith.constant 1.000000e+00 : f32
    %32 = vector.broadcast %cst_10 : f32 to vector<2x32xf32>
    %33 = arith.addf %32, %31 : vector<2x32xf32>
    %34 = arith.divf %32, %33 : vector<2x32xf32>
    %35 = vector.shape_cast %34 : vector<2x32xf32> to vector<2x32x1xf32>
    %c0_11 = arith.constant 0 : index
    %c0_12 = arith.constant 0 : index
    %c0_13 = arith.constant 0 : index
    %36 = vector.load %arg1[%c0_11, %c0_12, %c0_13] : memref<2x32x256xf32, #tpu.memory_space<vmem>>, vector<2x32x256xf32>
    %37 = vector.broadcast %35 : vector<2x32x1xf32> to vector<2x32x256xf32>
    %38 = arith.mulf %36, %37 : vector<2x32x256xf32>
    %c0_14 = arith.constant 0 : index
    %c0_15 = arith.constant 0 : index
    %c0_16 = arith.constant 0 : index
    %39 = vector.load %arg4[%c0_14, %c0_15, %c0_16] : memref<2x32x256xf32, #tpu.memory_space<vmem>>, vector<2x32x256xf32>
    tpu.vector_store %arg4[%c0_14, %c0_15, %c0_16], %38 {strides = array<i32>} : memref<2x32x256xf32, #tpu.memory_space<vmem>>, vector<2x32x256xf32>,
    return
  }
  func.func @transform_0(%arg0: i32) -> (i32, i32, i32) {
    %c0_i32 = arith.constant 0 : i32
    %c0_i32_0 = arith.constant 0 : i32
    %c0_i32_1 = arith.constant 0 : i32
    return %arg0, %c0_i32, %c0_i32_0 : i32, i32, i32
  }
  func.func @transform_1(%arg0: i32) -> (i32, i32) {
    %c0_i32 = arith.constant 0 : i32
    %c0_i32_0 = arith.constant 0 : i32
    %c0_i32_1 = arith.constant 0 : i32
    return %c0_i32, %c0_i32_0 : i32, i32
  }
  func.func @transform_2(%arg0: i32) -> (i32, i32) {
    %c0_i32 = arith.constant 0 : i32
    %c0_i32_0 = arith.constant 0 : i32
    %c0_i32_1 = arith.constant 0 : i32
    return %c0_i32, %c0_i32_0 : i32, i32
  }
  func.func @transform_3(%arg0: i32) -> (i32, i32, i32) {
    %c0_i32 = arith.constant 0 : i32
    %c0_i32_0 = arith.constant 0 : i32
    %c0_i32_1 = arith.constant 0 : i32
    return %arg0, %c0_i32, %c0_i32_0 : i32, i32, i32
  }
}

</mosaic_0001>

<llo_original>
// kernel: tpu_custom_call.1
$region0: #{tpu_custom_call.1}
  #allocation0 [shape = 'u32[]', space=smem, size = 0x4, offset = 0x4, fixed_abs, tag = 'smem constant byte address 0x4 - core index']
  #allocation1 [shape = 'u32[144,128]{1,0:T(1,128)}', space=vmem, size = 0x12000, scoped, tag = 'internal scratch']
  %s0 = inlined_call_operand.hbm [shape: f32[2,32,256], index: 0, kind: input, shape index: {}]
  %s1 = inlined_call_operand.hbm [shape: f32[2,32], index: 1, kind: input, shape index: {}]
  %s2 = inlined_call_operand.vmem [shape: f32[2,32], index: 2, kind: input, shape index: {}]
  %s3 = inlined_call_operand.hbm [shape: f32[2,32,256], index: 3, kind: output, shape index: {}]
  %s4 = sld [smem:[#allocation0]]
  $region30: #{tpu_custom_call.1} parent=0
    _
  %s6 = ssub.s32 1, %s4
  %s7 = scalar_select 0, %s6, %s4
  $region1: #{tpu_custom_call.1} parent=0
    #allocation2 [shape = 'u8[65536]{0}', space=vmem, size = 0x10000, scoped, tag = 'input window, operand 0, single buffered']
    #allocation3 [shape = 's32[1]{0}', space=sflag, size = 0x4, scoped, tag = 'scoped memory for tpu_custom_call.1']
    #allocation4 [shape = 's32[1]{0}', space=sflag, size = 0x4, scoped, tag = 'scoped memory for tpu_custom_call.1']
    #allocation5 [shape = 'u8[1024]{0}', space=vmem, size = 0x400, scoped, tag = 'input window, operand 1, single buffered']
    #allocation6 [shape = 's32[1]{0}', space=sflag, size = 0x4, scoped, tag = 'scoped memory for tpu_custom_call.1']
    #allocation7 [shape = 'u8[65536]{0}', space=vmem, size = 0x10000, scoped, tag = 'output window, operand 0, single buffered']
    %8 = vsyncpa [#allocation3], 0
    %9 = vsyncpa [#allocation6], 0
    %10 = vsyncpa [#allocation4], 0
    // Predicated region
    $region2: #{tpu_custom_call.1} parent=1 // pred_check
      _
    $region3: #{tpu_custom_call.1} parent=1 // pred_check_branch
      %12 = sbr.rel (0) target = $region5
    $region4: #{tpu_custom_call.1} parent=1 // pred_region
      %s14 = ssub.s32 2048, 2048
      %15 = vsyncadd [#allocation3], %s14
      %s16 = sshll.u32 [#allocation2], 4
      %s17 = int_to_ptr.vmem [resolvable:$true] %s16
      %22 = dma.hbm_to_vmem [thread:$0]  %s0, 2048, %s17, [#allocation3], 256, 256, 16
    $region5: #{tpu_custom_call.1} parent=1 // pred_fallthru
      _
    // Predicated region
    $region6: #{tpu_custom_call.1} parent=1 // pred_check
      _
    $region7: #{tpu_custom_call.1} parent=1 // pred_check_branch
      %24 = sbr.rel (0) target = $region9
    $region8: #{tpu_custom_call.1} parent=1 // pred_region
      %s26 = ssub.s32 32, 32
      %27 = vsyncadd [#allocation6], %s26
      %s29 = sshll.u32 [#allocation5], 4
      %s30 = int_to_ptr.vmem [resolvable:$true] %s29
      %32 = dma.hbm_to_vmem [thread:$0]  %s1, 32, %s30, [#allocation6]
    $region9: #{tpu_custom_call.1} parent=1 // pred_fallthru
      _
    // Predicated region
    $region10: #{tpu_custom_call.1} parent=1 // pred_check
      _
    $region11: #{tpu_custom_call.1} parent=1 // pred_check_branch
      %34 = sbr.rel (0) target = $region13
    $region12: #{tpu_custom_call.1} parent=1 // pred_region
      _
    $region13: #{tpu_custom_call.1} parent=1 // pred_fallthru
      _
    // Predicated region
    $region14: #{tpu_custom_call.1} parent=1 // pred_check
      _
    $region15: #{tpu_custom_call.1} parent=1 // pred_check_branch
      %36 = sbr.rel (0) target = $region17
    $region16: #{tpu_custom_call.1} parent=1 // pred_region
      %37 = dma.done [#allocation3], 2048
    $region17: #{tpu_custom_call.1} parent=1 // pred_fallthru
      _
    // Predicated region
    $region18: #{tpu_custom_call.1} parent=1 // pred_check
      _
    $region19: #{tpu_custom_call.1} parent=1 // pred_check_branch
      %39 = sbr.rel (0) target = $region21
    $region20: #{tpu_custom_call.1} parent=1 // pred_region
      %40 = dma.done [#allocation6], 32
    $region21: #{tpu_custom_call.1} parent=1 // pred_fallthru
      _
    %v41 = vld [vmem:[#allocation2] sm:$0xff]
    %v42 = vld [vmem:[#allocation2 + $0x8] sm:$0xff]
    %v43 = vld [vmem:[#allocation2 + $0x10] sm:$0xff]
    %v44 = vld [vmem:[#allocation2 + $0x18] sm:$0xff]
    %v45 = vld [vmem:[#allocation2 + $0x20] sm:$0xff]
    %v46 = vld [vmem:[#allocation2 + $0x28] sm:$0xff]
    %v47 = vld [vmem:[#allocation2 + $0x30] sm:$0xff]
    %v48 = vld [vmem:[#allocation2 + $0x38] sm:$0xff]
    %v49 = vld [vmem:[#allocation2 + $0x40] sm:$0xff]
    %v50 = vld [vmem:[#allocation2 + $0x48] sm:$0xff]
    %v51 = vld [vmem:[#allocation2 + $0x50] sm:$0xff]
    %v52 = vld [vmem:[#allocation2 + $0x58] sm:$0xff]
    %v53 = vld [vmem:[#allocation2 + $0x60] sm:$0xff]
    %v54 = vld [vmem:[#allocation2 + $0x68] sm:$0xff]
    %v55 = vld [vmem:[#allocation2 + $0x70] sm:$0xff]
    %v56 = vld [vmem:[#allocation2 + $0x78] sm:$0xff]
    %v57 = vadd.f32 %v41, %v42
    %58 = vadd.xlane.f32.xlu0 %v57
    %v59 = vpop.xlane.xlu0 %58
    %v60 = vadd.f32 %v43, %v44
    %61 = vadd.xlane.f32.xlu0 %v60
    %v62 = vpop.xlane.xlu0 %61
    %v63 = vadd.f32 %v45, %v46
    %64 = vadd.xlane.f32.xlu0 %v63
    %v65 = vpop.xlane.xlu0 %64
    %v66 = vadd.f32 %v47, %v48
    %67 = vadd.xlane.f32.xlu0 %v66
    %v68 = vpop.xlane.xlu0 %67
    %v69 = vadd.f32 %v49, %v50
    %70 = vadd.xlane.f32.xlu0 %v69
    %v71 = vpop.xlane.xlu0 %70
    %v72 = vadd.f32 %v51, %v52
    %73 = vadd.xlane.f32.xlu0 %v72
    %v74 = vpop.xlane.xlu0 %73
    %v75 = vadd.f32 %v53, %v54
    %76 = vadd.xlane.f32.xlu0 %v75
    %v77 = vpop.xlane.xlu0 %76
    %v78 = vadd.f32 %v55, %v56
    %79 = vadd.xlane.f32.xlu0 %v78
    %v80 = vpop.xlane.xlu0 %79
    %v81 = vmul.f32 %v59, 0.00390625
    %v82 = vmul.f32 %v62, 0.00390625
    %v83 = vmul.f32 %v65, 0.00390625
    %v84 = vmul.f32 %v68, 0.00390625
    %v85 = vmul.f32 %v71, 0.00390625
    %v86 = vmul.f32 %v74, 0.00390625
    %v87 = vmul.f32 %v77, 0.00390625
    %v88 = vmul.f32 %v80, 0.00390625
    %v89 = vld [vmem:[#allocation5] sm:$0x3]
    %v90 = vld [vmem:[%s2] sm:$0x3]
    %v91 = vlaneseq
    %v92 = vshrl.u32 %v91, 7
    %v93 = vsub.s32 0, %v92
    %v94 = vrot.slane %v89, %v93
    %97 = vbcast.lane.b32.xlu0 %v94, 256
    %v98 = vpop.permute.xlu0 %97
    %s100 = sor.u32 256, 8
    %101 = vbcast.lane.b32.xlu0 %v94, %s100
    %v102 = vpop.permute.xlu0 %101
    %s104 = sor.u32 256, 16
    %105 = vbcast.lane.b32.xlu0 %v94, %s104
    %v106 = vpop.permute.xlu0 %105
    %s108 = sor.u32 256, 24
    %109 = vbcast.lane.b32.xlu0 %v94, %s108
    %v110 = vpop.permute.xlu0 %109
    %v115 = vmul.f32 %v81, %v98
    %v116 = vmul.f32 %v82, %v102
    %v117 = vmul.f32 %v83, %v106
    %v118 = vmul.f32 %v84, %v110
    %v119 = vmul.f32 %v85, %v98
    %v120 = vmul.f32 %v86, %v102
    %v121 = vmul.f32 %v87, %v106
    %v122 = vmul.f32 %v88, %v110
    %131 = vset.pattern.permute.xlu0 0
    %132 = vperm.xlu0 %131, %v115
    %v133 = vpop.permute.xlu0 %132
    %134 = vset.pattern.permute.xlu0 0
    %135 = vperm.xlu0 %134, %v116
    %v136 = vpop.permute.xlu0 %135
    %137 = vset.pattern.permute.xlu0 0
    %138 = vperm.xlu0 %137, %v117
    %v139 = vpop.permute.xlu0 %138
    %140 = vset.pattern.permute.xlu0 0
    %141 = vperm.xlu0 %140, %v118
    %v142 = vpop.permute.xlu0 %141
    %143 = vset.pattern.permute.xlu0 0
    %144 = vperm.xlu0 %143, %v119
    %v145 = vpop.permute.xlu0 %144
    %146 = vset.pattern.permute.xlu0 0
    %147 = vperm.xlu0 %146, %v120
    %v148 = vpop.permute.xlu0 %147
    %149 = vset.pattern.permute.xlu0 0
    %150 = vperm.xlu0 %149, %v121
    %v151 = vpop.permute.xlu0 %150
    %152 = vset.pattern.permute.xlu0 0
    %153 = vperm.xlu0 %152, %v122
    %v154 = vpop.permute.xlu0 %153
    %v155 = vlaneseq
    %v156 = vand.u32 %v155, 127
    %v157 = vlaneseq
    %v158 = vshrl.u32 %v157, 7
    %v159 = vsub.s32 %v156, %v158
    %v160 = vrot.slane %v133, %v159
    %v161 = vadd.s32 %v156, 4294967288
    %v162 = vlaneseq
    %v163 = vshrl.u32 %v162, 7
    %v164 = vsub.s32 %v161, %v163
    %v165 = vrot.slane %v136, %v164
    %vm166 = vcmask 130112
    %v167 = vsel %vm166, %v165, %v160
    %v168 = vadd.s32 %v156, 4294967280
    %v169 = vlaneseq
    %v170 = vshrl.u32 %v169, 7
    %v171 = vsub.s32 %v168, %v170
    %v172 = vrot.slane %v139, %v171
    %vm173 = vcmask 195712
    %v174 = vsel %vm173, %v172, %v167
    %v175 = vadd.s32 %v156, 4294967272
    %v176 = vlaneseq
    %v177 = vshrl.u32 %v176, 7
    %v178 = vsub.s32 %v175, %v177
    %v179 = vrot.slane %v142, %v178
    %vm180 = vcmask 261312
    %v181 = vsel %vm180, %v179, %v174
    %v182 = vlaneseq
    %v183 = vshrl.u32 %v182, 7
    %v184 = vsub.s32 %v156, %v183
    %v185 = vrot.slane %v145, %v184
    %v186 = vlaneseq
    %v187 = vshrl.u32 %v186, 7
    %v188 = vsub.s32 %v161, %v187
    %v189 = vrot.slane %v148, %v188
    %v190 = vsel %vm166, %v189, %v185
    %v191 = vlaneseq
    %v192 = vshrl.u32 %v191, 7
    %v193 = vsub.s32 %v168, %v192
    %v194 = vrot.slane %v151, %v193
    %v195 = vsel %vm173, %v194, %v190
    %v196 = vlaneseq
    %v197 = vshrl.u32 %v196, 7
    %v198 = vsub.s32 %v175, %v197
    %v199 = vrot.slane %v154, %v198
    %v200 = vsel %vm180, %v199, %v195
    %vm201 = vcmask 1041409
    %v202 = vsel %vm201, %v200, %v181
    %vm204 = vcmask 254976
    %v205 = vsel %vm204, %v202, 0.0
    %206 = vadd.xlane.f32.xlu0 %v205
    %v207 = vpop.xlane.xlu0 %206
    %v208 = vlaneseq
    %v209 = vshrl.u32 %v208, 7
    %v210 = vsub.s32 1, %v209
    %v211 = vrot.slane %v89, %v210
    %214 = vbcast.lane.b32.xlu0 %v211, 256
    %v215 = vpop.permute.xlu0 %214
    %s217 = sor.u32 256, 8
    %218 = vbcast.lane.b32.xlu0 %v211, %s217
    %v219 = vpop.permute.xlu0 %218
    %s221 = sor.u32 256, 16
    %222 = vbcast.lane.b32.xlu0 %v211, %s221
    %v223 = vpop.permute.xlu0 %222
    %s225 = sor.u32 256, 24
    %226 = vbcast.lane.b32.xlu0 %v211, %s225
    %v227 = vpop.permute.xlu0 %226
    %v232 = vmul.f32 %v81, %v215
    %v233 = vmul.f32 %v82, %v219
    %v234 = vmul.f32 %v83, %v223
    %v235 = vmul.f32 %v84, %v227
    %v236 = vmul.f32 %v85, %v215
    %v237 = vmul.f32 %v86, %v219
    %v238 = vmul.f32 %v87, %v223
    %v239 = vmul.f32 %v88, %v227
    %248 = vset.pattern.permute.xlu0 0
    %249 = vperm.xlu0 %248, %v232
    %v250 = vpop.permute.xlu0 %249
    %251 = vset.pattern.permute.xlu0 0
    %252 = vperm.xlu0 %251, %v233
    %v253 = vpop.permute.xlu0 %252
    %254 = vset.pattern.permute.xlu0 0
    %255 = vperm.xlu0 %254, %v234
    %v256 = vpop.permute.xlu0 %255
    %257 = vset.pattern.permute.xlu0 0
    %258 = vperm.xlu0 %257, %v235
    %v259 = vpop.permute.xlu0 %258
    %260 = vset.pattern.permute.xlu0 0
    %261 = vperm.xlu0 %260, %v236
    %v262 = vpop.permute.xlu0 %261
    %263 = vset.pattern.permute.xlu0 0
    %264 = vperm.xlu0 %263, %v237
    %v265 = vpop.permute.xlu0 %264
    %266 = vset.pattern.permute.xlu0 0
    %267 = vperm.xlu0 %266, %v238
    %v268 = vpop.permute.xlu0 %267
    %269 = vset.pattern.permute.xlu0 0
    %270 = vperm.xlu0 %269, %v239
    %v271 = vpop.permute.xlu0 %270
    %v272 = vlaneseq
    %v273 = vshrl.u32 %v272, 7
    %v274 = vsub.s32 %v156, %v273
    %v275 = vrot.slane %v250, %v274
    %v276 = vlaneseq
    %v277 = vshrl.u32 %v276, 7
    %v278 = vsub.s32 %v161, %v277
    %v279 = vrot.slane %v253, %v278
    %v280 = vsel %vm166, %v279, %v275
    %v281 = vlaneseq
    %v282 = vshrl.u32 %v281, 7
    %v283 = vsub.s32 %v168, %v282
    %v284 = vrot.slane %v256, %v283
    %v285 = vsel %vm173, %v284, %v280
    %v286 = vlaneseq
    %v287 = vshrl.u32 %v286, 7
    %v288 = vsub.s32 %v175, %v287
    %v289 = vrot.slane %v259, %v288
    %v290 = vsel %vm180, %v289, %v285
    %v291 = vlaneseq
    %v292 = vshrl.u32 %v291, 7
    %v293 = vsub.s32 %v156, %v292
    %v294 = vrot.slane %v262, %v293
    %v295 = vlaneseq
    %v296 = vshrl.u32 %v295, 7
    %v297 = vsub.s32 %v161, %v296
    %v298 = vrot.slane %v265, %v297
    %v299 = vsel %vm166, %v298, %v294
    %v300 = vlaneseq
    %v301 = vshrl.u32 %v300, 7
    %v302 = vsub.s32 %v168, %v301
    %v303 = vrot.slane %v268, %v302
    %v304 = vsel %vm173, %v303, %v299
    %v305 = vlaneseq
    %v306 = vshrl.u32 %v305, 7
    %v307 = vsub.s32 %v175, %v306
    %v308 = vrot.slane %v271, %v307
    %v309 = vsel %vm180, %v308, %v304
    %v310 = vsel %vm201, %v309, %v290
    %v312 = vsel %vm204, %v310, 0.0
    %313 = vadd.xlane.f32.xlu0 %v312
    %v314 = vpop.xlane.xlu0 %313
    %vm315 = vcmask 7168
    %v316 = vsel %vm315, %v207, %v314
    %v317 = vmax.f32 %v316, 0.0
    %319 = vset.pattern.permute.xlu0 0
    %320 = vperm.xlu0 %319, %v317
    %v321 = vpop.permute.xlu0 %320
    %v323 = vlaneseq
    %v324 = vshrl.u32 %v323, 7
    %v325 = vsub.s32 0, %v324
    %v326 = vrot.slane %v90, %v325
    %v327 = vmul.f32 %v321, %v326
    %328 = vset.pattern.permute.xlu0 1
    %329 = vperm.xlu0 %328, %v317
    %v330 = vpop.permute.xlu0 %329
    %v332 = vlaneseq
    %v333 = vshrl.u32 %v332, 7
    %v334 = vsub.s32 1, %v333
    %v335 = vrot.slane %v90, %v334
    %v336 = vmul.f32 %v330, %v335
    %v337 = vadd.f32 %v327, %v336
    %v338 = vxor.u32 %v337, 2147483648
    %v339 = vmul.f32 %v338, 1.442695
    %v340 = vpow.pop %v339
    %v341 = vadd.f32 %v340, 1.0
    %v342 = vrcp.pop %v341
    %v343 = vmul.f32 1.0, %v342
    %v344 = vlaneseq
    %v345 = vshrl.u32 %v344, 7
    %v346 = vsub.s32 0, %v345
    %v347 = vrot.slane %v343, %v346
    %349 = vbcast.lane.b32.xlu0 %v347, 256
    %v350 = vpop.permute.xlu0 %349
    %s352 = sor.u32 256, 8
    %353 = vbcast.lane.b32.xlu0 %v347, %s352
    %v354 = vpop.permute.xlu0 %353
    %s356 = sor.u32 256, 16
    %357 = vbcast.lane.b32.xlu0 %v347, %s356
    %v358 = vpop.permute.xlu0 %357
    %s360 = sor.u32 256, 24
    %361 = vbcast.lane.b32.xlu0 %v347, %s360
    %v362 = vpop.permute.xlu0 %361
    %v363 = vlaneseq
    %v364 = vshrl.u32 %v363, 7
    %v365 = vsub.s32 1, %v364
    %v366 = vrot.slane %v343, %v365
    %368 = vbcast.lane.b32.xlu0 %v366, 256
    %v369 = vpop.permute.xlu0 %368
    %s371 = sor.u32 256, 8
    %372 = vbcast.lane.b32.xlu0 %v366, %s371
    %v373 = vpop.permute.xlu0 %372
    %s375 = sor.u32 256, 16
    %376 = vbcast.lane.b32.xlu0 %v366, %s375
    %v377 = vpop.permute.xlu0 %376
    %s379 = sor.u32 256, 24
    %380 = vbcast.lane.b32.xlu0 %v366, %s379
    %v381 = vpop.permute.xlu0 %380
    %v382 = vmul.f32 %v41, %v350
    %v383 = vmul.f32 %v42, %v350
    %v384 = vmul.f32 %v43, %v354
    %v385 = vmul.f32 %v44, %v354
    %v386 = vmul.f32 %v45, %v358
    %v387 = vmul.f32 %v46, %v358
    %v388 = vmul.f32 %v47, %v362
    %v389 = vmul.f32 %v48, %v362
    %v390 = vmul.f32 %v49, %v369
    %v391 = vmul.f32 %v50, %v369
    %v392 = vmul.f32 %v51, %v373
    %v393 = vmul.f32 %v52, %v373
    %v394 = vmul.f32 %v53, %v377
    %v395 = vmul.f32 %v54, %v377
    %v396 = vmul.f32 %v55, %v381
    %v397 = vmul.f32 %v56, %v381
    %398 = vst [vmem:[#allocation7] sm:$0xff] %v382
    %399 = vst [vmem:[#allocation7 + $0x8] sm:$0xff] %v383
    %400 = vst [vmem:[#allocation7 + $0x10] sm:$0xff] %v384
    %401 = vst [vmem:[#allocation7 + $0x18] sm:$0xff] %v385
    %402 = vst [vmem:[#allocation7 + $0x20] sm:$0xff] %v386
    %403 = vst [vmem:[#allocation7 + $0x28] sm:$0xff] %v387
    %404 = vst [vmem:[#allocation7 + $0x30] sm:$0xff] %v388
    %405 = vst [vmem:[#allocation7 + $0x38] sm:$0xff] %v389
    %406 = vst [vmem:[#allocation7 + $0x40] sm:$0xff] %v390
    %407 = vst [vmem:[#allocation7 + $0x48] sm:$0xff] %v391
    %408 = vst [vmem:[#allocation7 + $0x50] sm:$0xff] %v392
    %409 = vst [vmem:[#allocation7 + $0x58] sm:$0xff] %v393
    %410 = vst [vmem:[#allocation7 + $0x60] sm:$0xff] %v394
    %411 = vst [vmem:[#allocation7 + $0x68] sm:$0xff] %v395
    %412 = vst [vmem:[#allocation7 + $0x70] sm:$0xff] %v396
    %413 = vst [vmem:[#allocation7 + $0x78] sm:$0xff] %v397
    // Predicated region
    $region22: #{tpu_custom_call.1} parent=1 // pred_check
      _
    $region23: #{tpu_custom_call.1} parent=1 // pred_check_branch
      %415 = sbr.rel (0) target = $region25
    $region24: #{tpu_custom_call.1} parent=1 // pred_region
      %s417 = ssub.s32 2048, 2048
      %418 = vsyncadd [#allocation4], %s417
      %s419 = sshll.u32 [#allocation7], 4
      %s420 = int_to_ptr.vmem [resolvable:$true] %s419
      %425 = dma.vmem_to_hbm [thread:$0]  %s420, 2048, %s3, [#allocation4], 256, 256, 16
    $region25: #{tpu_custom_call.1} parent=1 // pred_fallthru
      _
    // Predicated region
    $region26: #{tpu_custom_call.1} parent=1 // pred_check
      _
    $region27: #{tpu_custom_call.1} parent=1 // pred_check_branch
      %427 = sbr.rel (0) target = $region29
    $region28: #{tpu_custom_call.1} parent=1 // pred_region
      %428 = dma.done [#allocation4], 2048
    $region29: #{tpu_custom_call.1} parent=1 // pred_fallthru
      _
    %429 = vsyncpa [#allocation3], 1
    %430 = vsyncpa [#allocation6], 1
    %431 = vsyncpa [#allocation4], 1

</llo_original>
